<compile_context>
chip_gen: v7x
topology: tpu7x:2x2x1
jax: 0.10.0
libtpu: 0.0.40
codegen_flags: <defaults>
</compile_context>

<pallas_src>
import functools

import jax
import jax.numpy as jnp
from jax.experimental import pallas as pl
from jax.experimental.pallas import tpu as pltpu


ENT_BUFFER_TARGET_BYTES = 4 << 20    # per ent-tile buffer (double-buffered)
MIN_PIPELINE_STEPS = 8               # aim for >= 8 grid steps when possible


def _round_up(v, m):
    return (v + m - 1) // m * m


def _vmem_capacity_bytes():
    try:
        return int(pltpu.get_tpu_info().vmem_capacity_bytes)
    except Exception:
        return 64 << 20              # conservative (v7x per-TC VMEM)


# ---------------------------------------------------------------------------
# Pure-JAX helpers (glue, outside the kernels)
# ---------------------------------------------------------------------------
def _quat_split(v, rank):
    return (v[:, :rank],
            v[:, rank:2 * rank],
            v[:, 2 * rank:3 * rank],
            v[:, 3 * rank:4 * rank])


def _quantize_rows_int8(w):
    """Per-row symmetric int8 quantization of the entity table."""
    amax = jnp.max(jnp.abs(w.astype(jnp.float32)), axis=1, keepdims=True)
    scale = jnp.where(amax > 0, amax / 127.0, 1.0)                 # (N, 1)
    q = jnp.clip(jnp.round(w.astype(jnp.float32) / scale), -127, 127)
    return q.astype(jnp.int8), scale.astype(jnp.float32).reshape(1, -1)  # (1, N)


# ---------------------------------------------------------------------------
# Kernel 1 (once per forward, batch-tiled): Hamilton product + norms.
# ---------------------------------------------------------------------------
def prep_kernel(lhs_ref, rel_ref, rhs_ref, q_ref, ln_ref, rn_ref, cn_ref, *, rank):
    r = rank

    def slab(ref, i):
        return ref[:, i * r:(i + 1) * r].astype(jnp.float32)

    s_a, x_a, y_a, z_a = (slab(lhs_ref, i) for i in range(4))
    s_b, x_b, y_b, z_b = (slab(rel_ref, i) for i in range(4))
    s_c, x_c, y_c, z_c = (slab(rhs_ref, i) for i in range(4))

    dt = q_ref.dtype
    # Write A/B/C/D straight into the q lane slices (no concatenate relayout).
    q_ref[:, 0 * r:1 * r] = (s_a * s_b - x_a * x_b - y_a * y_b - z_a * z_b).astype(dt)
    q_ref[:, 1 * r:2 * r] = (s_a * x_b + s_b * x_a + y_a * z_b - y_b * z_a).astype(dt)
    q_ref[:, 2 * r:3 * r] = (s_a * y_b + s_b * y_a + z_a * x_b - z_b * x_a).astype(dt)
    q_ref[:, 3 * r:4 * r] = (s_a * z_b + s_b * z_a + x_a * y_b - x_b * y_a).astype(dt)

    ln_ref[...] = jnp.sqrt(s_a * s_a + x_a * x_a + y_a * y_a + z_a * z_a)
    rn_ref[...] = jnp.sqrt(s_b * s_b + x_b * x_b + y_b * y_b + z_b * z_b)
    cn_ref[...] = jnp.sqrt(s_c * s_c + x_c * x_c + y_c * y_c + z_c * z_c)


# ---------------------------------------------------------------------------
# Kernel 2 (hot loop): one MXU matmul per streamed entity tile.
#   scores_tile = q @ ent_tile^T  (contraction ((1,),(1,)) -> no XLU transpose,
#   tile_n stays on the lane axis of the output -> lane-dense stores)
# ---------------------------------------------------------------------------
def scores_kernel(q_ref, ent_ref, out_ref):
    acc = jax.lax.dot_general(
        q_ref[...], ent_ref[...], (((1,), (1,)), ((), ())),
        preferred_element_type=jnp.float32)
    out_ref[...] = acc.astype(out_ref.dtype)


def scores_scaled_kernel(q_ref, ent_ref, scale_ref, out_ref, *, compute_dtype):
    # int8 (or fp8) entity tile, per-row scale applied to the f32 accumulator.
    ent = ent_ref[...].astype(compute_dtype)
    acc = jax.lax.dot_general(
        q_ref[...].astype(compute_dtype), ent, (((1,), (1,)), ((), ())),
        preferred_element_type=jnp.float32)
    out_ref[...] = (acc * scale_ref[...]).astype(out_ref.dtype)


# ---------------------------------------------------------------------------
# Wrapper.  Embedding gather is glue; the hot path lives in the Pallas kernels.
# ---------------------------------------------------------------------------
def quate_forward(x, ent_weight, rel_weight, rank, *, tile_n=None,
                  table_dtype=None, quantize=None, scores_dtype=jnp.float32):
    N, D4 = ent_weight.shape
    assert D4 == 4 * rank

    if table_dtype is not None:
        # bf16 tables halve the dominant HBM stream (kernel is memory-bound).
        ent_weight = ent_weight.astype(table_dtype)
        rel_weight = rel_weight.astype(table_dtype)

    # Gather the query embeddings (plain-JAX glue, fused by XLA).
    lhs = ent_weight[x[:, 0]]          # (B, 4R)
    rel = rel_weight[x[:, 1]]          # (B, 4R)
    rhs = ent_weight[x[:, 2]]          # (B, 4R)

    q_dtype = ent_weight.dtype
    q_item = jnp.dtype(q_dtype).itemsize
    out_item = jnp.dtype(scores_dtype).itemsize

    # ---- Conditional batch padding (do NOT blanket-pad tiny batches). ------
    B = lhs.shape[0]
    sub = 16 if q_item == 2 else 8
    if B >= 128:
        Bp = _round_up(B, 128)         # fills MXU rows once batch is large
    else:
        Bp = _round_up(max(B, sub), sub)
    if Bp != B:
        pad = ((0, Bp - B), (0, 0))
        lhs = jnp.pad(lhs, pad)
        rel = jnp.pad(rel, pad)
        rhs = jnp.pad(rhs, pad)

    vmem_cap = _vmem_capacity_bytes()
    d4_pad = _round_up(D4, 128)
    rank_pad = _round_up(rank, 128)

    # --- Kernel 1: q + norms, batch-tiled, explicit VMEM limit. -------------
    tile_b = Bp if Bp <= 128 else 128
    grid_b = Bp // tile_b
    prep_vmem = (2 * tile_b * d4_pad * q_item * 3        # lhs/rel/rhs (dbl-buf)
                 + 2 * tile_b * d4_pad * q_item          # q out
                 + 3 * 2 * tile_b * rank_pad * 4         # norm outs
                 + (1 << 20))
    prep_limit = int(min(max(prep_vmem, 16 << 20), vmem_cap))

    q, lhs_n, rel_n, rhs_n = pl.pallas_call(
        functools.partial(prep_kernel, rank=rank),
        out_shape=(jax.ShapeDtypeStruct((Bp, D4), q_dtype),
                   jax.ShapeDtypeStruct((Bp, rank), jnp.float32),
                   jax.ShapeDtypeStruct((Bp, rank), jnp.float32),
                   jax.ShapeDtypeStruct((Bp, rank), jnp.float32)),
        grid_spec=pltpu.PrefetchScalarGridSpec(
            num_scalar_prefetch=0,
            grid=(grid_b,),
            in_specs=[pl.BlockSpec((tile_b, D4), lambda i: (i, 0)),
                      pl.BlockSpec((tile_b, D4), lambda i: (i, 0)),
                      pl.BlockSpec((tile_b, D4), lambda i: (i, 0))],
            out_specs=(pl.BlockSpec((tile_b, D4), lambda i: (i, 0)),
                       pl.BlockSpec((tile_b, rank), lambda i: (i, 0)),
                       pl.BlockSpec((tile_b, rank), lambda i: (i, 0)),
                       pl.BlockSpec((tile_b, rank), lambda i: (i, 0)))),
        compiler_params=pltpu.CompilerParams(
            dimension_semantics=("parallel",),
            vmem_limit_bytes=prep_limit),
    )(lhs, rel, rhs)

    # --- Prepare the streamed entity table (optional int8 quantization). ----
    if quantize == "int8":
        ent_stream, ent_scale = _quantize_rows_int8(ent_weight)
    elif quantize is None:
        ent_stream, ent_scale = ent_weight, None
    else:
        raise ValueError(f"unsupported quantize={quantize!r}")
    ent_item = jnp.dtype(ent_stream.dtype).itemsize

    # --- tile_n selection: moderate tiles, correct VMEM accounting. ---------
    #   fixed   : q resident (double-buffered by the pipeline)
    #   per_row : ent tile + scores tile (+ scale tile), all double-buffered
    fixed = 2 * Bp * d4_pad * q_item
    per_row = 2 * d4_pad * ent_item + 2 * Bp * out_item + (2 * 4 if ent_scale is not None else 0)
    budget = min(vmem_cap // 2, 32 << 20)

    if tile_n is None:
        fit_cap = max(128, ((budget - fixed) // max(per_row, 1)) // 128 * 128)
        byte_cap = max(128, (ENT_BUFFER_TARGET_BYTES // (d4_pad * ent_item)) // 128 * 128)
        step_cap = max(128, _round_up(pl.cdiv(N, MIN_PIPELINE_STEPS), 128))
        tile_n = min(fit_cap, byte_cap, step_cap)
    tile_n = max(128, min(tile_n, _round_up(N, 128)))
    grid_n = pl.cdiv(N, tile_n)

    scores_vmem = fixed + per_row * tile_n + (1 << 20)
    scores_limit = int(min(max(scores_vmem, 16 << 20), vmem_cap))

    cost = pl.CostEstimate(
        flops=2 * Bp * D4 * N,
        transcendentals=0,
        bytes_accessed=N * D4 * ent_item + Bp * D4 * q_item + Bp * N * out_item)

    if ent_scale is None:
        in_specs = [pl.BlockSpec((Bp, D4), lambda j: (0, 0)),        # q (resident)
                    pl.BlockSpec((tile_n, D4), lambda j: (j, 0))]    # ent tile
        operands = (q, ent_stream)
        kernel = scores_kernel
    else:
        in_specs = [pl.BlockSpec((Bp, D4), lambda j: (0, 0)),
                    pl.BlockSpec((tile_n, D4), lambda j: (j, 0)),
                    pl.BlockSpec((1, tile_n), lambda j: (0, j))]     # per-row scale
        operands = (q, ent_stream, ent_scale)
        kernel = functools.partial(scores_scaled_kernel, compute_dtype=q_dtype)

    scores = pl.pallas_call(
        kernel,
        out_shape=jax.ShapeDtypeStruct((Bp, N), scores_dtype),
        grid_spec=pltpu.PrefetchScalarGridSpec(
            num_scalar_prefetch=0,
            grid=(grid_n,),
            in_specs=in_specs,
            out_specs=pl.BlockSpec((Bp, tile_n), lambda j: (0, j))),
        compiler_params=pltpu.CompilerParams(
            dimension_semantics=("parallel",),       # megacore: shard ent tiles
            vmem_limit_bytes=scores_limit),
        cost_estimate=cost,
    )(*operands)

    return scores[:B], (lhs_n[:B], rel_n[:B], rhs_n[:B])


# ---------------------------------------------------------------------------
# Pure-JAX reference (mirrors the PyTorch forward exactly).
# ---------------------------------------------------------------------------
def quate_forward_ref(x, ent_weight, rel_weight, rank):
    lhs = ent_weight[x[:, 0]]
    rel = rel_weight[x[:, 1]]
    rhs = ent_weight[x[:, 2]]
    s_a, x_a, y_a, z_a = _quat_split(lhs, rank)
    s_b, x_b, y_b, z_b = _quat_split(rel, rank)
    A = s_a * s_b - x_a * x_b - y_a * y_b - z_a * z_b
    B = s_a * x_b + s_b * x_a + y_a * z_b - y_b * z_a
    C = s_a * y_b + s_b * y_a + z_a * x_b - z_b * x_a
    D = s_a * z_b + s_b * z_a + x_a * y_b - x_b * y_a
    ts = _quat_split(ent_weight, rank)
    scores = A @ ts[0].T + B @ ts[1].T + C @ ts[2].T + D @ ts[3].T

    def norm(v):
        s, xq, yq, zq = _quat_split(v, rank)
        return jnp.sqrt(s ** 2 + xq ** 2 + yq ** 2 + zq ** 2)

    return scores, (norm(lhs), norm(rel), norm(rhs))


def _close_to_ref(a, ref, frac):
    a = jnp.asarray(a, jnp.float32)
    ref = jnp.asarray(ref, jnp.float32)
    scale = float(jnp.max(jnp.abs(ref))) + 1e-30
    return float(jnp.max(jnp.abs(a - ref))) <= frac * scale


if __name__ == "__main__":
    # Small, QuatE-consistent shapes: 512 entities, 64 relations, rank=32.
    # (N kept a multiple of 128 so every entity tile is full; partial last
    #  tiles are handled by Pallas masking but are not exercised here.)
    n_ent, n_rel, rank = 512, 64, 32
    init_size = 0.001
    batch = 8

    key = jax.random.PRNGKey(0)
    k_ent, k_rel, k_l, k_r, k_h = jax.random.split(key, 5)

    # nn.Embedding default init is N(0, 1), then scaled by init_size.
    ent_weight = (jax.random.normal(k_ent, (n_ent, 4 * rank), jnp.float32)
                  * init_size)
    rel_weight = (jax.random.normal(k_rel, (n_rel, 4 * rank), jnp.float32)
                  * init_size)

    def make_x(b, seed):
        kk = jax.random.split(jax.random.PRNGKey(seed), 3)
        return jnp.stack([
            jax.random.randint(kk[0], (b,), 0, n_ent),
            jax.random.randint(kk[1], (b,), 0, n_rel),
            jax.random.randint(kk[2], (b,), 0, n_ent),
        ], axis=1).astype(jnp.int32)

    x = make_x(batch, 0)

    ref_scores, (ref_ln, ref_rn, ref_cn) = quate_forward_ref(
        x, ent_weight, rel_weight, rank)

    # 1) Default (auto tile) f32 path: exact parity with the reference.
    scores, (ln, rn, cn) = quate_forward(x, ent_weight, rel_weight, rank)
    jax.block_until_ready((scores, ln, rn, cn))
    assert scores.shape == (batch, n_ent)
    assert ln.shape == rn.shape == cn.shape == (batch, rank)
    assert jnp.allclose(scores, ref_scores, atol=1e-6, rtol=1e-5)
    assert jnp.allclose(ln, ref_ln, atol=1e-6, rtol=1e-5)
    assert jnp.allclose(rn, ref_rn, atol=1e-6, rtol=1e-5)
    assert jnp.allclose(cn, ref_cn, atol=1e-6, rtol=1e-5)

    # 2) Explicit small tile -> multi-step pipelined grid (4 entity tiles).
    scores_t, (ln_t, _, _) = quate_forward(
        x, ent_weight, rel_weight, rank, tile_n=128)
    jax.block_until_ready(scores_t)
    assert jnp.allclose(scores_t, ref_scores, atol=1e-6, rtol=1e-5)
    assert jnp.allclose(ln_t, ref_ln, atol=1e-6, rtol=1e-5)

    # 3) Batch >= 128 -> padded to a 128-multiple, batch-tiled prep kernel.
    x_big = make_x(130, 1)
    ref_big, (ref_big_ln, _, _) = quate_forward_ref(
        x_big, ent_weight, rel_weight, rank)
    scores_big, (ln_big, _, _) = quate_forward(
        x_big, ent_weight, rel_weight, rank)
    jax.block_until_ready(scores_big)
    assert scores_big.shape == (130, n_ent)
    assert jnp.allclose(scores_big, ref_big, atol=1e-6, rtol=1e-5)
    assert jnp.allclose(ln_big, ref_big_ln, atol=1e-6, rtol=1e-5)

    # 4) bf16 scores output (halves the writeback stream); loose parity.
    scores_bf16out, _ = quate_forward(
        x, ent_weight, rel_weight, rank, scores_dtype=jnp.bfloat16)
    jax.block_until_ready(scores_bf16out)
    assert scores_bf16out.dtype == jnp.bfloat16
    assert _close_to_ref(scores_bf16out, ref_scores, frac=0.02)

    # 5) bf16 tables (halves the entity-table stream); loose parity.
    scores_bf, (ln_bf, _, _) = quate_forward(
        x, ent_weight, rel_weight, rank, table_dtype=jnp.bfloat16)
    jax.block_until_ready(scores_bf)
    assert _close_to_ref(scores_bf, ref_scores, frac=0.05)
    assert _close_to_ref(ln_bf, ref_ln, frac=0.02)

    # 6) int8-quantized entity table (per-row scale, dequant in the kernel
    #    epilogue); smoke-level parity.
    scores_q8, (ln_q8, _, _) = quate_forward(
        x, ent_weight, rel_weight, rank, quantize="int8")
    jax.block_until_ready(scores_q8)
    assert scores_q8.shape == (batch, n_ent)
    assert bool(jnp.isfinite(scores_q8).all())
    assert _close_to_ref(scores_q8, ref_scores, frac=0.1)
    assert jnp.allclose(ln_q8, ref_ln, atol=1e-6, rtol=1e-5)

    # TODO(synk): the host-side get_ranking() filtering loop is inference glue
    # and is not translated; only the forward() math is implemented here.
    print("KERNEL_OK")
</pallas_src>

<mosaic_0001>
module attributes {stable_mosaic.version = 11 : i64} {
  func.func @prep_kernel(%arg0: i32, %arg1: memref<8x128xf32, #tpu.memory_space<vmem>>, %arg2: memref<8x128xf32, #tpu.memory_space<vmem>>, %arg3: memref<8x128xf32, #tpu.memory_space<vmem>>, %arg4: memref<8x128xf32, #tpu.memory_space<vmem>>, %arg5: memref<8x32xf32, #tpu.memory_space<vmem>>, %arg6: memref<8x32xf32, #tpu.memory_space<vmem>>, %arg7: memref<8x32xf32, #tpu.memory_space<vmem>>) attributes {dimension_semantics = [#tpu.dimension_semantics<parallel>], iteration_bounds = array<i64: 1>, scalar_prefetch = 0 : i64, scratch_operands = 0 : i64, tpu.core_type = #tpu.core_type<tc>, window_params = [{transform_indices = @transform_0, window_bounds = array<i64: 8, 128>}, {transform_indices = @transform_1, window_bounds = array<i64: 8, 128>}, {transform_indices = @transform_2, window_bounds = array<i64: 8, 128>}, {transform_indices = @transform_3, window_bounds = array<i64: 8, 128>}, {transform_indices = @transform_4, window_bounds = array<i64: 8, 32>}, {transform_indices = @transform_5, window_bounds = array<i64: 8, 32>}, {transform_indices = @transform_6, window_bounds = array<i64: 8, 32>}]} {
    %c0 = arith.constant 0 : index
    %c0_0 = arith.constant 0 : index
    %0 = vector.load %arg1[%c0, %c0_0] : memref<8x128xf32, #tpu.memory_space<vmem>>, vector<8x32xf32>
    %c0_1 = arith.constant 0 : index
    %c32 = arith.constant 32 : index
    %1 = vector.load %arg1[%c0_1, %c32] : memref<8x128xf32, #tpu.memory_space<vmem>>, vector<8x32xf32>
    %c0_2 = arith.constant 0 : index
    %c64 = arith.constant 64 : index
    %2 = vector.load %arg1[%c0_2, %c64] : memref<8x128xf32, #tpu.memory_space<vmem>>, vector<8x32xf32>
    %c0_3 = arith.constant 0 : index
    %c96 = arith.constant 96 : index
    %3 = vector.load %arg1[%c0_3, %c96] : memref<8x128xf32, #tpu.memory_space<vmem>>, vector<8x32xf32>
    %c0_4 = arith.constant 0 : index
    %c0_5 = arith.constant 0 : index
    %4 = vector.load %arg2[%c0_4, %c0_5] : memref<8x128xf32, #tpu.memory_space<vmem>>, vector<8x32xf32>
    %c0_6 = arith.constant 0 : index
    %c32_7 = arith.constant 32 : index
    %5 = vector.load %arg2[%c0_6, %c32_7] : memref<8x128xf32, #tpu.memory_space<vmem>>, vector<8x32xf32>
    %c0_8 = arith.constant 0 : index
    %c64_9 = arith.constant 64 : index
    %6 = vector.load %arg2[%c0_8, %c64_9] : memref<8x128xf32, #tpu.memory_space<vmem>>, vector<8x32xf32>
    %c0_10 = arith.constant 0 : index
    %c96_11 = arith.constant 96 : index
    %7 = vector.load %arg2[%c0_10, %c96_11] : memref<8x128xf32, #tpu.memory_space<vmem>>, vector<8x32xf32>
    %c0_12 = arith.constant 0 : index
    %c0_13 = arith.constant 0 : index
    %8 = vector.load %arg3[%c0_12, %c0_13] : memref<8x128xf32, #tpu.memory_space<vmem>>, vector<8x32xf32>
    %c0_14 = arith.constant 0 : index
    %c32_15 = arith.constant 32 : index
    %9 = vector.load %arg3[%c0_14, %c32_15] : memref<8x128xf32, #tpu.memory_space<vmem>>, vector<8x32xf32>
    %c0_16 = arith.constant 0 : index
    %c64_17 = arith.constant 64 : index
    %10 = vector.load %arg3[%c0_16, %c64_17] : memref<8x128xf32, #tpu.memory_space<vmem>>, vector<8x32xf32>
    %c0_18 = arith.constant 0 : index
    %c96_19 = arith.constant 96 : index
    %11 = vector.load %arg3[%c0_18, %c96_19] : memref<8x128xf32, #tpu.memory_space<vmem>>, vector<8x32xf32>
    %12 = arith.mulf %0, %4 : vector<8x32xf32>
    %13 = arith.mulf %1, %5 : vector<8x32xf32>
    %14 = arith.subf %12, %13 : vector<8x32xf32>
    %15 = arith.mulf %2, %6 : vector<8x32xf32>
    %16 = arith.subf %14, %15 : vector<8x32xf32>
    %17 = arith.mulf %3, %7 : vector<8x32xf32>
    %18 = arith.subf %16, %17 : vector<8x32xf32>
    %c0_20 = arith.constant 0 : index
    %c0_21 = arith.constant 0 : index
    %19 = vector.load %arg4[%c0_20, %c0_21] : memref<8x128xf32, #tpu.memory_space<vmem>>, vector<8x32xf32>
    tpu.vector_store %arg4[%c0_20, %c0_21], %18 {strides = array<i32>} : memref<8x128xf32, #tpu.memory_space<vmem>>, vector<8x32xf32>,
    %20 = arith.mulf %0, %5 : vector<8x32xf32>
    %21 = arith.mulf %4, %1 : vector<8x32xf32>
    %22 = arith.addf %20, %21 : vector<8x32xf32>
    %23 = arith.mulf %2, %7 : vector<8x32xf32>
    %24 = arith.addf %22, %23 : vector<8x32xf32>
    %25 = arith.mulf %6, %3 : vector<8x32xf32>
    %26 = arith.subf %24, %25 : vector<8x32xf32>
    %c0_22 = arith.constant 0 : index
    %c32_23 = arith.constant 32 : index
    %27 = vector.load %arg4[%c0_22, %c32_23] : memref<8x128xf32, #tpu.memory_space<vmem>>, vector<8x32xf32>
    tpu.vector_store %arg4[%c0_22, %c32_23], %26 {strides = array<i32>} : memref<8x128xf32, #tpu.memory_space<vmem>>, vector<8x32xf32>,
    %28 = arith.mulf %0, %6 : vector<8x32xf32>
    %29 = arith.mulf %4, %2 : vector<8x32xf32>
    %30 = arith.addf %28, %29 : vector<8x32xf32>
    %31 = arith.mulf %3, %5 : vector<8x32xf32>
    %32 = arith.addf %30, %31 : vector<8x32xf32>
    %33 = arith.mulf %7, %1 : vector<8x32xf32>
    %34 = arith.subf %32, %33 : vector<8x32xf32>
    %c0_24 = arith.constant 0 : index
    %c64_25 = arith.constant 64 : index
    %35 = vector.load %arg4[%c0_24, %c64_25] : memref<8x128xf32, #tpu.memory_space<vmem>>, vector<8x32xf32>
    tpu.vector_store %arg4[%c0_24, %c64_25], %34 {strides = array<i32>} : memref<8x128xf32, #tpu.memory_space<vmem>>, vector<8x32xf32>,
    %36 = arith.mulf %0, %7 : vector<8x32xf32>
    %37 = arith.mulf %4, %3 : vector<8x32xf32>
    %38 = arith.addf %36, %37 : vector<8x32xf32>
    %39 = arith.mulf %1, %6 : vector<8x32xf32>
    %40 = arith.addf %38, %39 : vector<8x32xf32>
    %41 = arith.mulf %5, %2 : vector<8x32xf32>
    %42 = arith.subf %40, %41 : vector<8x32xf32>
    %c0_26 = arith.constant 0 : index
    %c96_27 = arith.constant 96 : index
    %43 = vector.load %arg4[%c0_26, %c96_27] : memref<8x128xf32, #tpu.memory_space<vmem>>, vector<8x32xf32>
    tpu.vector_store %arg4[%c0_26, %c96_27], %42 {strides = array<i32>} : memref<8x128xf32, #tpu.memory_space<vmem>>, vector<8x32xf32>,
    %44 = arith.mulf %0, %0 : vector<8x32xf32>
    %45 = arith.mulf %1, %1 : vector<8x32xf32>
    %46 = arith.addf %44, %45 : vector<8x32xf32>
    %47 = arith.mulf %2, %2 : vector<8x32xf32>
    %48 = arith.addf %46, %47 : vector<8x32xf32>
    %49 = arith.mulf %3, %3 : vector<8x32xf32>
    %50 = arith.addf %48, %49 : vector<8x32xf32>
    %51 = math.sqrt %50 : vector<8x32xf32>
    %c0_28 = arith.constant 0 : index
    %c0_29 = arith.constant 0 : index
    %52 = vector.load %arg5[%c0_28, %c0_29] : memref<8x32xf32, #tpu.memory_space<vmem>>, vector<8x32xf32>
    tpu.vector_store %arg5[%c0_28, %c0_29], %51 {strides = array<i32>} : memref<8x32xf32, #tpu.memory_space<vmem>>, vector<8x32xf32>,
    %53 = arith.mulf %4, %4 : vector<8x32xf32>
    %54 = arith.mulf %5, %5 : vector<8x32xf32>
    %55 = arith.addf %53, %54 : vector<8x32xf32>
    %56 = arith.mulf %6, %6 : vector<8x32xf32>
    %57 = arith.addf %55, %56 : vector<8x32xf32>
    %58 = arith.mulf %7, %7 : vector<8x32xf32>
    %59 = arith.addf %57, %58 : vector<8x32xf32>
    %60 = math.sqrt %59 : vector<8x32xf32>
    %c0_30 = arith.constant 0 : index
    %c0_31 = arith.constant 0 : index
    %61 = vector.load %arg6[%c0_30, %c0_31] : memref<8x32xf32, #tpu.memory_space<vmem>>, vector<8x32xf32>
    tpu.vector_store %arg6[%c0_30, %c0_31], %60 {strides = array<i32>} : memref<8x32xf32, #tpu.memory_space<vmem>>, vector<8x32xf32>,
    %62 = arith.mulf %8, %8 : vector<8x32xf32>
    %63 = arith.mulf %9, %9 : vector<8x32xf32>
    %64 = arith.addf %62, %63 : vector<8x32xf32>
    %65 = arith.mulf %10, %10 : vector<8x32xf32>
    %66 = arith.addf %64, %65 : vector<8x32xf32>
    %67 = arith.mulf %11, %11 : vector<8x32xf32>
    %68 = arith.addf %66, %67 : vector<8x32xf32>
    %69 = math.sqrt %68 : vector<8x32xf32>
    %c0_32 = arith.constant 0 : index
    %c0_33 = arith.constant 0 : index
    %70 = vector.load %arg7[%c0_32, %c0_33] : memref<8x32xf32, #tpu.memory_space<vmem>>, vector<8x32xf32>
    tpu.vector_store %arg7[%c0_32, %c0_33], %69 {strides = array<i32>} : memref<8x32xf32, #tpu.memory_space<vmem>>, vector<8x32xf32>,
    return
  }
  func.func @transform_0(%arg0: i32) -> (i32, i32) {
    %c0_i32 = arith.constant 0 : i32
    %c0_i32_0 = arith.constant 0 : i32
    return %arg0, %c0_i32 : i32, i32
  }
  func.func @transform_1(%arg0: i32) -> (i32, i32) {
    %c0_i32 = arith.constant 0 : i32
    %c0_i32_0 = arith.constant 0 : i32
    return %arg0, %c0_i32 : i32, i32
  }
  func.func @transform_2(%arg0: i32) -> (i32, i32) {
    %c0_i32 = arith.constant 0 : i32
    %c0_i32_0 = arith.constant 0 : i32
    return %arg0, %c0_i32 : i32, i32
  }
  func.func @transform_3(%arg0: i32) -> (i32, i32) {
    %c0_i32 = arith.constant 0 : i32
    %c0_i32_0 = arith.constant 0 : i32
    return %arg0, %c0_i32 : i32, i32
  }
  func.func @transform_4(%arg0: i32) -> (i32, i32) {
    %c0_i32 = arith.constant 0 : i32
    %c0_i32_0 = arith.constant 0 : i32
    return %arg0, %c0_i32 : i32, i32
  }
  func.func @transform_5(%arg0: i32) -> (i32, i32) {
    %c0_i32 = arith.constant 0 : i32
    %c0_i32_0 = arith.constant 0 : i32
    return %arg0, %c0_i32 : i32, i32
  }
  func.func @transform_6(%arg0: i32) -> (i32, i32) {
    %c0_i32 = arith.constant 0 : i32
    %c0_i32_0 = arith.constant 0 : i32
    return %arg0, %c0_i32 : i32, i32
  }
}

</mosaic_0001>

<llo_original>
// kernel: tpu_custom_call.1
$region0: #{tpu_custom_call.1}
  #allocation0 [shape = 'u32[]', space=smem, size = 0x4, offset = 0x4, fixed_abs, tag = 'smem constant byte address 0x4 - core index']
  #allocation1 [shape = 'u32[144,128]{1,0:T(1,128)}', space=vmem, size = 0x12000, scoped, tag = 'internal scratch']
  %s0 = inlined_call_operand.hbm [shape: f32[8,128], index: 0, kind: input, shape index: {}]
  %s1 = inlined_call_operand.hbm [shape: f32[8,128], index: 1, kind: input, shape index: {}]
  %s2 = inlined_call_operand.hbm [shape: f32[8,128], index: 2, kind: input, shape index: {}]
  %s3 = inlined_call_operand.hbm [shape: f32[8,128], index: 3, kind: output, shape index: {0}]
  %s4 = inlined_call_operand.hbm [shape: f32[8,32], index: 4, kind: output, shape index: {1}]
  %s5 = inlined_call_operand.hbm [shape: f32[8,32], index: 5, kind: output, shape index: {2}]
  %s6 = inlined_call_operand.hbm [shape: f32[8,32], index: 6, kind: output, shape index: {3}]
  %7 = xla_tuple %s3, %s4, %s5, %s6
  %s8 = sld [smem:[#allocation0]]
  $region58: #{tpu_custom_call.1} parent=0
    _
  %s10 = ssub.s32 1, %s8
  %s11 = scalar_select 0, %s10, %s8
  $region1: #{tpu_custom_call.1} parent=0
    #allocation2 [shape = 'u8[4096]{0}', space=vmem, size = 0x1000, scoped, tag = 'input window, operand 0, single buffered']
    #allocation3 [shape = 's32[1]{0}', space=sflag, size = 0x4, scoped, tag = 'scoped memory for tpu_custom_call.1']
    #allocation4 [shape = 's32[1]{0}', space=sflag, size = 0x4, scoped, tag = 'scoped memory for tpu_custom_call.1']
    #allocation5 [shape = 'u8[4096]{0}', space=vmem, size = 0x1000, scoped, tag = 'input window, operand 1, single buffered']
    #allocation6 [shape = 's32[1]{0}', space=sflag, size = 0x4, scoped, tag = 'scoped memory for tpu_custom_call.1']
    #allocation7 [shape = 'u8[4096]{0}', space=vmem, size = 0x1000, scoped, tag = 'input window, operand 2, single buffered']
    #allocation8 [shape = 'u8[4096]{0}', space=vmem, size = 0x1000, scoped, tag = 'output window, operand 0, single buffered']
    #allocation9 [shape = 'u8[4096]{0}', space=vmem, size = 0x1000, scoped, tag = 'output window, operand 1, single buffered']
    #allocation10 [shape = 's32[1]{0}', space=sflag, size = 0x4, scoped, tag = 'scoped memory for tpu_custom_call.1']
    #allocation11 [shape = 'u8[4096]{0}', space=vmem, size = 0x1000, scoped, tag = 'output window, operand 2, single buffered']
    #allocation12 [shape = 'u8[4096]{0}', space=vmem, size = 0x1000, scoped, tag = 'output window, operand 3, single buffered']
    #allocation13 [shape = 's32[1]{0}', space=sflag, size = 0x4, scoped, tag = 'scoped memory for tpu_custom_call.1']
    %12 = vsyncpa [#allocation3], 0
    %13 = vsyncpa [#allocation6], 0
    %14 = vsyncpa [#allocation4], 0
    %15 = vsyncpa [#allocation10], 0
    %16 = vsyncpa [#allocation13], 0
    // Predicated region
    $region2: #{tpu_custom_call.1} parent=1 // pred_check
      _
    $region3: #{tpu_custom_call.1} parent=1 // pred_check_branch
      %18 = sbr.rel (0) target = $region5
    $region4: #{tpu_custom_call.1} parent=1 // pred_region
      %s20 = ssub.s32 128, 128
      %21 = vsyncadd [#allocation3], %s20
      %s23 = sshll.u32 [#allocation2], 4
      %s24 = int_to_ptr.vmem [resolvable:$true] %s23
      %26 = dma.hbm_to_vmem [thread:$0]  %s0, 128, %s24, [#allocation3]
    $region5: #{tpu_custom_call.1} parent=1 // pred_fallthru
      _
    // Predicated region
    $region6: #{tpu_custom_call.1} parent=1 // pred_check
      _
    $region7: #{tpu_custom_call.1} parent=1 // pred_check_branch
      %28 = sbr.rel (0) target = $region9
    $region8: #{tpu_custom_call.1} parent=1 // pred_region
      %s30 = ssub.s32 128, 128
      %31 = vsyncadd [#allocation6], %s30
      %s33 = sshll.u32 [#allocation5], 4
      %s34 = int_to_ptr.vmem [resolvable:$true] %s33
      %36 = dma.hbm_to_vmem [thread:$0]  %s1, 128, %s34, [#allocation6]
    $region9: #{tpu_custom_call.1} parent=1 // pred_fallthru
      _
    // Predicated region
    $region10: #{tpu_custom_call.1} parent=1 // pred_check
      _
    $region11: #{tpu_custom_call.1} parent=1 // pred_check_branch
      %38 = sbr.rel (0) target = $region13
    $region12: #{tpu_custom_call.1} parent=1 // pred_region
      %s40 = ssub.s32 128, 128
      %41 = vsyncadd [#allocation6], %s40
      %s43 = sshll.u32 [#allocation7], 4
      %s44 = int_to_ptr.vmem [resolvable:$true] %s43
      %46 = dma.hbm_to_vmem [thread:$0]  %s2, 128, %s44, [#allocation6]
    $region13: #{tpu_custom_call.1} parent=1 // pred_fallthru
      _
    // Predicated region
    $region14: #{tpu_custom_call.1} parent=1 // pred_check
      _
    $region15: #{tpu_custom_call.1} parent=1 // pred_check_branch
      %48 = sbr.rel (0) target = $region17
    $region16: #{tpu_custom_call.1} parent=1 // pred_region
      %49 = dma.done [#allocation3], 128
    $region17: #{tpu_custom_call.1} parent=1 // pred_fallthru
      _
    // Predicated region
    $region18: #{tpu_custom_call.1} parent=1 // pred_check
      _
    $region19: #{tpu_custom_call.1} parent=1 // pred_check_branch
      %51 = sbr.rel (0) target = $region21
    $region20: #{tpu_custom_call.1} parent=1 // pred_region
      %52 = dma.done [#allocation6], 128
    $region21: #{tpu_custom_call.1} parent=1 // pred_fallthru
      _
    // Predicated region
    $region22: #{tpu_custom_call.1} parent=1 // pred_check
      _
    $region23: #{tpu_custom_call.1} parent=1 // pred_check_branch
      %54 = sbr.rel (0) target = $region25
    $region24: #{tpu_custom_call.1} parent=1 // pred_region
      %55 = dma.done [#allocation6], 128
    $region25: #{tpu_custom_call.1} parent=1 // pred_fallthru
      _
    %v56 = vld [vmem:[#allocation2] sm:$0xff]
    %v57 = vld [vmem:[#allocation5] sm:$0xff]
    %v58 = vld [vmem:[#allocation7] sm:$0xff]
    %v59 = vmul.f32 %v56, %v57
    %61 = vrot.lane.b32.xlu0 %v59, 96
    %v62 = vpop.permute.xlu0 %61
    %v64 = vsub.f32 %v59, %v62
    %65 = vrot.lane.b32.xlu0 %v59, 64
    %v66 = vpop.permute.xlu0 %65
    %v68 = vsub.f32 %v64, %v66
    %69 = vrot.lane.b32.xlu0 %v59, 32
    %v70 = vpop.permute.xlu0 %69
    %v72 = vsub.f32 %v68, %v70
    %vm73 = vcmask 261120
    %74 = vst.msk [vmem:[#allocation8] sm:$0xff] %vm73, %v72
    %76 = vrot.lane.b32.xlu0 %v57, 96
    %v77 = vpop.permute.xlu0 %76
    %v79 = vmul.f32 %v56, %v77
    %81 = vrot.lane.b32.xlu0 %v56, 96
    %v82 = vpop.permute.xlu0 %81
    %v84 = vmul.f32 %v57, %v82
    %v85 = vadd.f32 %v79, %v84
    %87 = vrot.lane.b32.xlu0 %v79, 64
    %v88 = vpop.permute.xlu0 %87
    %v90 = vadd.f32 %v85, %v88
    %92 = vrot.lane.b32.xlu0 %v84, 64
    %v93 = vpop.permute.xlu0 %92
    %v95 = vsub.f32 %v90, %v93
    %97 = vrot.lane.b32.xlu0 %v95, 32
    %v98 = vpop.permute.xlu0 %97
    %vm100 = vcmask 523520
    %101 = vst.msk [vmem:[#allocation8] sm:$0xff] %vm100, %v98
    %102 = vrot.lane.b32.xlu0 %v57, 64
    %v103 = vpop.permute.xlu0 %102
    %v105 = vmul.f32 %v56, %v103
    %106 = vrot.lane.b32.xlu0 %v56, 64
    %v107 = vpop.permute.xlu0 %106
    %v109 = vmul.f32 %v57, %v107
    %v110 = vadd.f32 %v105, %v109
    %112 = vrot.lane.b32.xlu0 %v105, 32
    %v113 = vpop.permute.xlu0 %112
    %v115 = vadd.f32 %v110, %v113
    %117 = vrot.lane.b32.xlu0 %v109, 32
    %v118 = vpop.permute.xlu0 %117
    %v120 = vsub.f32 %v115, %v118
    %122 = vrot.lane.b32.xlu0 %v120, 64
    %v123 = vpop.permute.xlu0 %122
    %vm125 = vcmask 785920
    %126 = vst.msk [vmem:[#allocation8] sm:$0xff] %vm125, %v123
    %127 = vrot.lane.b32.xlu0 %v57, 32
    %v128 = vpop.permute.xlu0 %127
    %v130 = vmul.f32 %v56, %v128
    %131 = vrot.lane.b32.xlu0 %v56, 32
    %v132 = vpop.permute.xlu0 %131
    %v134 = vmul.f32 %v57, %v132
    %v135 = vadd.f32 %v130, %v134
    %136 = vrot.lane.b32.xlu0 %v79, 96
    %v137 = vpop.permute.xlu0 %136
    %v139 = vadd.f32 %v135, %v137
    %140 = vrot.lane.b32.xlu0 %v84, 96
    %v141 = vpop.permute.xlu0 %140
    %v143 = vsub.f32 %v139, %v141
    %145 = vrot.lane.b32.xlu0 %v143, 96
    %v146 = vpop.permute.xlu0 %145
    %vm148 = vcmask 1048320
    %149 = vst.msk [vmem:[#allocation8] sm:$0xff] %vm148, %v146
    %v150 = vmul.f32 %v56, %v56
    %152 = vrot.lane.b32.xlu0 %v150, 96
    %v153 = vpop.permute.xlu0 %152
    %v155 = vadd.f32 %v150, %v153
    %156 = vrot.lane.b32.xlu0 %v150, 64
    %v157 = vpop.permute.xlu0 %156
    %v159 = vadd.f32 %v155, %v157
    %160 = vrot.lane.b32.xlu0 %v150, 32
    %v161 = vpop.permute.xlu0 %160
    %v163 = vadd.f32 %v159, %v161
    %v164 = vrsqrt.pop %v163
    %v165 = vmul.f32 %v163, %v164
    %vm166 = vcmp.eq.f32.partialorder %v163, inf
    %v167 = vsel %vm166, %v163, %v165
    %vm168 = vcmp.eq.f32.partialorder %v163, 0.0
    %v169 = vand.u32 %v163, 2147483648
    %v170 = vsel %vm168, %v169, %v167
    %171 = vst.msk [vmem:[#allocation9] sm:$0xff] %vm73, %v170
    %v172 = vmul.f32 %v57, %v57
    %174 = vrot.lane.b32.xlu0 %v172, 96
    %v175 = vpop.permute.xlu0 %174
    %v177 = vadd.f32 %v172, %v175
    %178 = vrot.lane.b32.xlu0 %v172, 64
    %v179 = vpop.permute.xlu0 %178
    %v181 = vadd.f32 %v177, %v179
    %182 = vrot.lane.b32.xlu0 %v172, 32
    %v183 = vpop.permute.xlu0 %182
    %v185 = vadd.f32 %v181, %v183
    %v186 = vrsqrt.pop %v185
    %v187 = vmul.f32 %v185, %v186
    %vm188 = vcmp.eq.f32.partialorder %v185, inf
    %v189 = vsel %vm188, %v185, %v187
    %vm190 = vcmp.eq.f32.partialorder %v185, 0.0
    %v191 = vand.u32 %v185, 2147483648
    %v192 = vsel %vm190, %v191, %v189
    %193 = vst.msk [vmem:[#allocation11] sm:$0xff] %vm73, %v192
    %v194 = vmul.f32 %v58, %v58
    %196 = vrot.lane.b32.xlu0 %v194, 96
    %v197 = vpop.permute.xlu0 %196
    %v199 = vadd.f32 %v194, %v197
    %200 = vrot.lane.b32.xlu0 %v194, 64
    %v201 = vpop.permute.xlu0 %200
    %v203 = vadd.f32 %v199, %v201
    %204 = vrot.lane.b32.xlu0 %v194, 32
    %v205 = vpop.permute.xlu0 %204
    %v207 = vadd.f32 %v203, %v205
    %v208 = vrsqrt.pop %v207
    %v209 = vmul.f32 %v207, %v208
    %vm210 = vcmp.eq.f32.partialorder %v207, inf
    %v211 = vsel %vm210, %v207, %v209
    %vm212 = vcmp.eq.f32.partialorder %v207, 0.0
    %v213 = vand.u32 %v207, 2147483648
    %v214 = vsel %vm212, %v213, %v211
    %215 = vst.msk [vmem:[#allocation12] sm:$0xff] %vm73, %v214
    // Predicated region
    $region26: #{tpu_custom_call.1} parent=1 // pred_check
      _
    $region27: #{tpu_custom_call.1} parent=1 // pred_check_branch
      %217 = sbr.rel (0) target = $region29
    $region28: #{tpu_custom_call.1} parent=1 // pred_region
      %s219 = ssub.s32 128, 128
      %220 = vsyncadd [#allocation4], %s219
      %s222 = sshll.u32 [#allocation8], 4
      %s223 = int_to_ptr.vmem [resolvable:$true] %s222
      %225 = dma.vmem_to_hbm [thread:$0]  %s223, 128, %s3, [#allocation4]
    $region29: #{tpu_custom_call.1} parent=1 // pred_fallthru
      _
    // Predicated region
    $region30: #{tpu_custom_call.1} parent=1 // pred_check
      _
    $region31: #{tpu_custom_call.1} parent=1 // pred_check_branch
      %227 = sbr.rel (0) target = $region33
    $region32: #{tpu_custom_call.1} parent=1 // pred_region
      %s229 = ssub.s32 128, 128
      %230 = vsyncadd [#allocation10], %s229
      %s232 = sshll.u32 [#allocation9], 4
      %s233 = int_to_ptr.vmem [resolvable:$true] %s232
      %235 = dma.vmem_to_hbm [thread:$0]  %s233, 128, %s4, [#allocation10]
    $region33: #{tpu_custom_call.1} parent=1 // pred_fallthru
      _
    // Predicated region
    $region34: #{tpu_custom_call.1} parent=1 // pred_check
      _
    $region35: #{tpu_custom_call.1} parent=1 // pred_check_branch
      %237 = sbr.rel (0) target = $region37
    $region36: #{tpu_custom_call.1} parent=1 // pred_region
      %s239 = ssub.s32 128, 128
      %240 = vsyncadd [#allocation10], %s239
      %s242 = sshll.u32 [#allocation11], 4
      %s243 = int_to_ptr.vmem [resolvable:$true] %s242
      %245 = dma.vmem_to_hbm [thread:$0]  %s243, 128, %s5, [#allocation10]
    $region37: #{tpu_custom_call.1} parent=1 // pred_fallthru
      _
    // Predicated region
    $region38: #{tpu_custom_call.1} parent=1 // pred_check
      _
    $region39: #{tpu_custom_call.1} parent=1 // pred_check_branch
      %247 = sbr.rel (0) target = $region41
    $region40: #{tpu_custom_call.1} parent=1 // pred_region
      %s249 = ssub.s32 128, 128
      %250 = vsyncadd [#allocation13], %s249
      %s252 = sshll.u32 [#allocation12], 4
      %s253 = int_to_ptr.vmem [resolvable:$true] %s252
      %255 = dma.vmem_to_hbm [thread:$0]  %s253, 128, %s6, [#allocation13]
    $region41: #{tpu_custom_call.1} parent=1 // pred_fallthru
      _
    // Predicated region
    $region42: #{tpu_custom_call.1} parent=1 // pred_check
      _
    $region43: #{tpu_custom_call.1} parent=1 // pred_check_branch
      %257 = sbr.rel (0) target = $region45
    $region44: #{tpu_custom_call.1} parent=1 // pred_region
      %258 = dma.done [#allocation4], 128
    $region45: #{tpu_custom_call.1} parent=1 // pred_fallthru
      _
    // Predicated region
    $region46: #{tpu_custom_call.1} parent=1 // pred_check
      _
    $region47: #{tpu_custom_call.1} parent=1 // pred_check_branch
      %260 = sbr.rel (0) target = $region49
    $region48: #{tpu_custom_call.1} parent=1 // pred_region
      %261 = dma.done [#allocation10], 128
    $region49: #{tpu_custom_call.1} parent=1 // pred_fallthru
      _
    // Predicated region
    $region50: #{tpu_custom_call.1} parent=1 // pred_check
      _
    $region51: #{tpu_custom_call.1} parent=1 // pred_check_branch
      %263 = sbr.rel (0) target = $region53
    $region52: #{tpu_custom_call.1} parent=1 // pred_region
      %264 = dma.done [#allocation10], 128
    $region53: #{tpu_custom_call.1} parent=1 // pred_fallthru
      _
    // Predicated region
    $region54: #{tpu_custom_call.1} parent=1 // pred_check
      _
    $region55: #{tpu_custom_call.1} parent=1 // pred_check_branch
      %266 = sbr.rel (0) target = $region57
    $region56: #{tpu_custom_call.1} parent=1 // pred_region
      %267 = dma.done [#allocation13], 128
    $region57: #{tpu_custom_call.1} parent=1 // pred_fallthru
      _
    %268 = vsyncpa [#allocation3], 1
    %269 = vsyncpa [#allocation6], 1
    %270 = vsyncpa [#allocation4], 1
    %271 = vsyncpa [#allocation10], 1
    %272 = vsyncpa [#allocation13], 1

</llo_original>
